<compile_context>
chip_gen: v7x
topology: tpu7x:2x2x1
jax: 0.10.0
libtpu: 0.0.40
codegen_flags: <defaults>
</compile_context>

<pallas_src>
import functools

import jax
import jax.numpy as jnp
from jax import lax
from jax.experimental import pallas as pl
from jax.experimental.pallas import tpu as pltpu


# ---------------------------------------------------------------------------
# Kernels
# ---------------------------------------------------------------------------

def _dwconv_kernel_nhwc(x_ref, w_ref, b_ref, o_ref, *, ksize, with_shortcut):
    """NHWC path. x_ref/o_ref: (TB, H, W, TC); w_ref: (k, k, TC); b_ref: (1, 1, TC)."""
    TB, H, W, C = o_ref.shape
    pad = (ksize - 1) // 2

    x = x_ref[...]
    w = w_ref[...].astype(jnp.float32)            # loaded once per grid step
    bias = b_ref[0, 0, :].astype(jnp.float32)

    # Bias (and optional residual shortcut) folded into the accumulator init.
    acc = jnp.broadcast_to(bias, (TB, H, W, C))
    if with_shortcut:
        acc = acc + x.astype(jnp.float32)

    # Cast to f32 once (hoisted out of the tap loop) and build the zero halo along H,
    # an outer / non-tiled axis, so the concat is cheap.
    zrow = jnp.zeros((TB, pad, W, C), jnp.float32)
    xph = jnp.concatenate([zrow, x.astype(jnp.float32), zrow], axis=1)   # (TB, Hp, W, C)
    Hp = xph.shape[1]

    # ksize W-shifted views built once (only ksize-1 sublane relayouts), reused for every kh.
    shifts = []
    for kw in range(ksize):
        off = kw - pad
        if off == 0:
            s = xph
        elif off < 0:
            s = jnp.concatenate(
                [jnp.zeros((TB, Hp, -off, C), jnp.float32), xph[:, :, : W + off, :]], axis=2)
        else:
            s = jnp.concatenate(
                [xph[:, :, off:, :], jnp.zeros((TB, Hp, off, C), jnp.float32)], axis=2)
        shifts.append(s)

    # k*k multiply-accumulates; the per-tap H slice is along a non-tiled axis (free).
    for kh in range(ksize):
        for kw in range(ksize):
            acc = acc + shifts[kw][:, kh:kh + H, :, :] * w[kh, kw, :]

    o_ref[...] = acc.astype(o_ref.dtype)


def _dwconv_kernel_packed(x_ref, w_ref, b_ref, o_ref, *, ksize, with_shortcut, cdim):
    """Lane-dense small-C path.  x_ref/o_ref: (TB, H, W*C); w_ref: (k, k, W*C) with the
    W-boundary taps already zeroed in the wrapper; b_ref: (1, W*C)."""
    TB, H, WC = o_ref.shape
    pad = (ksize - 1) // 2

    x = x_ref[...]
    w = w_ref[...].astype(jnp.float32)
    bias = b_ref[0, :].astype(jnp.float32)

    acc = jnp.broadcast_to(bias, (TB, H, WC))
    if with_shortcut:
        acc = acc + x.astype(jnp.float32)

    # Zero halo along H (sublane axis here) and a single hoisted f32 cast.
    zrow = jnp.zeros((TB, pad, WC), jnp.float32)
    xph = jnp.concatenate([zrow, x.astype(jnp.float32), zrow], axis=1)   # (TB, Hp, WC)

    # W-shifts are lane rotations by +-C (XLU).  Wrapped-around lanes contribute nothing
    # because the corresponding weights were zeroed in the wrapper.
    shifts = []
    for kw in range(ksize):
        off = (kw - pad) * cdim
        if off == 0:
            shifts.append(xph)
        else:
            shifts.append(pltpu.roll(xph, shift=(-off) % WC, axis=2))

    for kh in range(ksize):
        for kw in range(ksize):
            acc = acc + shifts[kw][:, kh:kh + H, :] * w[kh, kw, :]

    o_ref[...] = acc.astype(o_ref.dtype)


# ---------------------------------------------------------------------------
# Tiling heuristics (generation-aware)
# ---------------------------------------------------------------------------

def _tpu_vmem_capacity_bytes():
    try:
        info = pltpu.get_tpu_info()
        for name in ("vmem_capacity_bytes", "vmem_size_bytes", "vmem_bytes"):
            cap = getattr(info, name, None)
            if cap:
                return int(cap)
    except Exception:
        pass
    return 64 * 1024 * 1024  # conservative (v7x-sized) fallback


def _block_budget_bytes():
    # In-kernel f32 temps + double-buffered I/O are roughly 8-9x the input block, so keep
    # each block to a small slice of physical VMEM (v5e/v6e: 128 MiB -> 6 MiB, v7x: 64 MiB -> ~3 MiB).
    return min(_tpu_vmem_capacity_bytes() // 20, 6 * 1024 * 1024)


def _vmem_limit_bytes():
    return min(_tpu_vmem_capacity_bytes() * 3 // 4, 100 * 1024 * 1024)


def _pick_c_block(C, H, W, itemsize, budget):
    """Largest multiple of 128 dividing C whose block fits the budget (divisor-aware)."""
    if C % 128 != 0:
        return C
    for d in sorted((d for d in range(128, C + 1, 128) if C % d == 0), reverse=True):
        if H * W * d * itemsize <= budget:
            return d
    return 128


def _pick_batch_block(B, per_sample_bytes, budget):
    tb = 1
    for d in range(1, B + 1):
        if B % d == 0 and d * per_sample_bytes <= budget:
            tb = d
    return tb


def _largest_divisor_below(n, below):
    for d in range(below - 1, 0, -1):
        if n % d == 0:
            return d
    return 1


# ---------------------------------------------------------------------------
# Wrapper
# ---------------------------------------------------------------------------

def dwconv_pallas(x, weight_kkc, bias_c, H, W, *, with_shortcut=False):
    """x: (B, H*W, C); weight_kkc: (k, k, C); bias_c: (C,). Returns (B, H*W, C)."""
    B, N, C = x.shape
    assert N == H * W
    k = int(weight_kkc.shape[0])
    assert k % 2 == 1, "padding=(k-1)//2 only matches SAME output size for odd k"

    itemsize = jnp.dtype(x.dtype).itemsize
    budget = _block_budget_bytes()
    vmem_limit = _vmem_limit_bytes()
    pad = (k - 1) // 2
    # TODO(synk): add H-tiling with a 1-row halo for very large H*W feature maps whose single
    # (batch, channel) block would exceed the VMEM budget.

    if C % 128 != 0 and (W * C) % 128 == 0:
        # ---- lane-dense packed path for small / non-128-multiple C ------------------------
        WC = W * C
        x3 = x.reshape(B, H, WC)
        # Tile weights/bias along the packed (W*C) lane axis; zero the W-boundary taps so the
        # in-kernel lane rotation needs no boundary masks.
        w_packed = jnp.tile(weight_kkc, (1, 1, W))                          # (k, k, W*C)
        w_pos = jnp.arange(WC) // C                                         # spatial w per lane
        kw_off = jnp.arange(k) - pad                                        # (k,)
        valid = ((w_pos[None, :] + kw_off[:, None] >= 0)
                 & (w_pos[None, :] + kw_off[:, None] < W))                  # (k, W*C)
        w_packed = w_packed * valid[None, :, :].astype(w_packed.dtype)
        b_packed = jnp.tile(bias_c, (W,)).reshape(1, WC)

        per_sample = H * WC * itemsize
        tb = _pick_batch_block(B, per_sample, budget)
        if B // tb < 2 <= B:       # keep >= 2 grid steps for megacore / v7x's 2 TCs
            tb = _largest_divisor_below(B, tb)
        nb = B // tb

        out3 = pl.pallas_call(
            functools.partial(_dwconv_kernel_packed, ksize=k,
                              with_shortcut=with_shortcut, cdim=C),
            out_shape=jax.ShapeDtypeStruct((B, H, WC), x.dtype),
            grid_spec=pltpu.PrefetchScalarGridSpec(
                num_scalar_prefetch=0,
                grid=(nb,),
                in_specs=[
                    pl.BlockSpec((tb, H, WC), lambda b: (b, 0, 0)),
                    pl.BlockSpec((k, k, WC), lambda b: (0, 0, 0)),
                    pl.BlockSpec((1, WC), lambda b: (0, 0)),
                ],
                out_specs=pl.BlockSpec((tb, H, WC), lambda b: (b, 0, 0)),
            ),
            compiler_params=pltpu.CompilerParams(
                dimension_semantics=("parallel",),
                vmem_limit_bytes=vmem_limit,
            ),
        )(x3, w_packed, b_packed)
        return out3.reshape(B, N, C)

    # ---- NHWC channel/batch-tiled path (C % 128 == 0) or generic full-C fallback ----------
    x4 = x.reshape(B, H, W, C)            # row-major over (H, W): matches 'B (H W) C'
    bias3 = bias_c.reshape(1, 1, C)

    tc = _pick_c_block(C, H, W, itemsize, budget)
    nc = C // tc
    per_sample = H * W * tc * itemsize
    tb = _pick_batch_block(B, per_sample, budget)
    if nc * (B // tb) < 2 <= B:            # keep >= 2 grid steps for megacore / v7x's 2 TCs
        tb = _largest_divisor_below(B, tb)
    nb = B // tb

    out4 = pl.pallas_call(
        functools.partial(_dwconv_kernel_nhwc, ksize=k, with_shortcut=with_shortcut),
        out_shape=jax.ShapeDtypeStruct((B, H, W, C), x.dtype),
        grid_spec=pltpu.PrefetchScalarGridSpec(
            num_scalar_prefetch=0,
            # Channel blocks outer, batch inner: weight/bias block indices are constant across
            # consecutive inner steps, so they are not re-DMA'd every iteration.
            grid=(nc, nb),
            in_specs=[
                pl.BlockSpec((tb, H, W, tc), lambda c, b: (b, 0, 0, c)),
                pl.BlockSpec((k, k, tc), lambda c, b: (0, 0, c)),
                pl.BlockSpec((1, 1, tc), lambda c, b: (0, 0, c)),
            ],
            out_specs=pl.BlockSpec((tb, H, W, tc), lambda c, b: (b, 0, 0, c)),
        ),
        compiler_params=pltpu.CompilerParams(
            dimension_semantics=("parallel", "parallel"),
            vmem_limit_bytes=vmem_limit,
        ),
    )(x4, weight_kkc, bias3)
    return out4.reshape(B, N, C)


# ---------------------------------------------------------------------------
# Reference + tests
# ---------------------------------------------------------------------------

def dwconv_reference(x, weight_kkc, bias_c, H, W, *, with_shortcut=False):
    """Pure-JAX reference matching PyTorch nn.Conv2d(dim, dim, k, 1, (k-1)//2, groups=dim)."""
    B, N, C = x.shape
    x_nchw = jnp.transpose(x.reshape(B, H, W, C), (0, 3, 1, 2))           # B C H W
    w_oihw = jnp.transpose(weight_kkc, (2, 0, 1))[:, None, :, :]          # (C, 1, k, k)
    y = lax.conv_general_dilated(
        x_nchw, w_oihw, window_strides=(1, 1), padding="SAME",
        feature_group_count=C,
        dimension_numbers=("NCHW", "OIHW", "NCHW"),
    )
    y = y + bias_c[None, :, None, None]
    y = jnp.transpose(y, (0, 2, 3, 1)).reshape(B, N, C)                   # B (H W) C
    if with_shortcut:
        y = y + x
    return y


def _run_case(key, B, H, W, C, k, with_shortcut):
    kx, kw, kb = jax.random.split(key, 3)
    x = jax.random.normal(kx, (B, H * W, C), dtype=jnp.float32)
    weight_kkc = jax.random.normal(kw, (k, k, C), dtype=jnp.float32) * 0.1
    bias_c = jax.random.normal(kb, (C,), dtype=jnp.float32) * 0.1

    out = jax.block_until_ready(
        dwconv_pallas(x, weight_kkc, bias_c, H, W, with_shortcut=with_shortcut))
    ref = jax.block_until_ready(
        dwconv_reference(x, weight_kkc, bias_c, H, W, with_shortcut=with_shortcut))
    if not jnp.allclose(out, ref, atol=1e-4, rtol=1e-4):
        raise AssertionError(
            f"Pallas DWConv mismatch (B={B},H={H},W={W},C={C},shortcut={with_shortcut})")


if __name__ == "__main__":
    key = jax.random.PRNGKey(0)
    k1, k2, k3, k4 = jax.random.split(key, 4)

    # Small-C lane-dense packed path (C=32, W*C=512 a multiple of 128).
    _run_case(k1, B=2, H=16, W=16, C=32, k=3, with_shortcut=False)
    # Packed path with the fused residual shortcut.
    _run_case(k2, B=2, H=16, W=16, C=32, k=3, with_shortcut=True)
    # NHWC path, divisor-aware channel block (tc=384) + batch-inner grid for weight reuse.
    _run_case(k3, B=2, H=8, W=8, C=384, k=3, with_shortcut=True)
    # Generic full-C fallback (neither C nor W*C a multiple of 128).
    _run_case(k4, B=2, H=10, W=10, C=24, k=3, with_shortcut=False)

    print("KERNEL_OK")
</pallas_src>

<mosaic_0001>
module attributes {stable_mosaic.version = 11 : i64} {
  func.func @_dwconv_kernel_packed(%arg0: i32, %arg1: memref<1x16x512xf32, #tpu.memory_space<vmem>>, %arg2: memref<3x3x512xf32, #tpu.memory_space<vmem>>, %arg3: memref<1x512xf32, #tpu.memory_space<vmem>>, %arg4: memref<1x16x512xf32, #tpu.memory_space<vmem>>) attributes {dimension_semantics = [#tpu.dimension_semantics<parallel>], iteration_bounds = array<i64: 2>, scalar_prefetch = 0 : i64, scratch_operands = 0 : i64, tpu.core_type = #tpu.core_type<tc>, window_params = [{transform_indices = @transform_0, window_bounds = array<i64: 1, 16, 512>}, {pipeline_mode = #tpu.pipeline_mode<synchronous>, transform_indices = @transform_1, window_bounds = array<i64: 3, 3, 512>}, {pipeline_mode = #tpu.pipeline_mode<synchronous>, transform_indices = @transform_2, window_bounds = array<i64: 1, 512>}, {transform_indices = @transform_3, window_bounds = array<i64: 1, 16, 512>}]} {
    %c0 = arith.constant 0 : index
    %c0_0 = arith.constant 0 : index
    %c0_1 = arith.constant 0 : index
    %0 = vector.load %arg1[%c0, %c0_0, %c0_1] : memref<1x16x512xf32, #tpu.memory_space<vmem>>, vector<1x16x512xf32>
    %c0_2 = arith.constant 0 : index
    %c0_3 = arith.constant 0 : index
    %c0_4 = arith.constant 0 : index
    %1 = vector.load %arg2[%c0_2, %c0_3, %c0_4] : memref<3x3x512xf32, #tpu.memory_space<vmem>>, vector<3x3x512xf32>
    %c0_5 = arith.constant 0 : index
    %c0_6 = arith.constant 0 : index
    %2 = vector.load %arg3[%c0_5, %c0_6] : memref<1x512xf32, #tpu.memory_space<vmem>>, vector<1x512xf32>
    %3 = vector.shape_cast %2 : vector<1x512xf32> to vector<512xf32>
    %4 = vector.shape_cast %3 : vector<512xf32> to vector<1x1x512xf32>
    %5 = vector.broadcast %4 : vector<1x1x512xf32> to vector<1x16x512xf32>
    %cst = arith.constant 0.000000e+00 : f32
    %6 = vector.broadcast %cst : f32 to vector<1x1x512xf32>
    %7 = tpu.concatenate %6, %0, %6 in 1 : vector<1x1x512xf32>, vector<1x16x512xf32>, vector<1x1x512xf32> -> vector<1x18x512xf32>
    %c32_i32 = arith.constant 32 : i32
    %8 = tpu.dynamic_rotate %7 by %c32_i32 dim 2 : vector<1x18x512xf32>, i32 -> vector<1x18x512xf32>
    %c480_i32 = arith.constant 480 : i32
    %9 = tpu.dynamic_rotate %7 by %c480_i32 dim 2 : vector<1x18x512xf32>, i32 -> vector<1x18x512xf32>
    %10 = vector.extract_strided_slice %8 {offsets = [0, 0, 0], sizes = [1, 16, 512], strides = [1, 1, 1]} : vector<1x18x512xf32> to vector<1x16x512xf32>
    %11 = vector.extract_strided_slice %1 {offsets = [0, 0, 0], sizes = [1, 1, 512], strides = [1, 1, 1]} : vector<3x3x512xf32> to vector<1x1x512xf32>
    %12 = vector.shape_cast %11 : vector<1x1x512xf32> to vector<512xf32>
    %13 = vector.shape_cast %12 : vector<512xf32> to vector<1x1x512xf32>
    %14 = vector.broadcast %13 : vector<1x1x512xf32> to vector<1x16x512xf32>
    %15 = arith.mulf %10, %14 : vector<1x16x512xf32>
    %16 = arith.addf %5, %15 : vector<1x16x512xf32>
    %17 = vector.extract_strided_slice %7 {offsets = [0, 0, 0], sizes = [1, 16, 512], strides = [1, 1, 1]} : vector<1x18x512xf32> to vector<1x16x512xf32>
    %18 = vector.extract_strided_slice %1 {offsets = [0, 1, 0], sizes = [1, 1, 512], strides = [1, 1, 1]} : vector<3x3x512xf32> to vector<1x1x512xf32>
    %19 = vector.shape_cast %18 : vector<1x1x512xf32> to vector<512xf32>
    %20 = vector.shape_cast %19 : vector<512xf32> to vector<1x1x512xf32>
    %21 = vector.broadcast %20 : vector<1x1x512xf32> to vector<1x16x512xf32>
    %22 = arith.mulf %17, %21 : vector<1x16x512xf32>
    %23 = arith.addf %16, %22 : vector<1x16x512xf32>
    %24 = vector.extract_strided_slice %9 {offsets = [0, 0, 0], sizes = [1, 16, 512], strides = [1, 1, 1]} : vector<1x18x512xf32> to vector<1x16x512xf32>
    %25 = vector.extract_strided_slice %1 {offsets = [0, 2, 0], sizes = [1, 1, 512], strides = [1, 1, 1]} : vector<3x3x512xf32> to vector<1x1x512xf32>
    %26 = vector.shape_cast %25 : vector<1x1x512xf32> to vector<512xf32>
    %27 = vector.shape_cast %26 : vector<512xf32> to vector<1x1x512xf32>
    %28 = vector.broadcast %27 : vector<1x1x512xf32> to vector<1x16x512xf32>
    %29 = arith.mulf %24, %28 : vector<1x16x512xf32>
    %30 = arith.addf %23, %29 : vector<1x16x512xf32>
    %31 = vector.extract_strided_slice %8 {offsets = [0, 1, 0], sizes = [1, 16, 512], strides = [1, 1, 1]} : vector<1x18x512xf32> to vector<1x16x512xf32>
    %32 = vector.extract_strided_slice %1 {offsets = [1, 0, 0], sizes = [1, 1, 512], strides = [1, 1, 1]} : vector<3x3x512xf32> to vector<1x1x512xf32>
    %33 = vector.shape_cast %32 : vector<1x1x512xf32> to vector<512xf32>
    %34 = vector.shape_cast %33 : vector<512xf32> to vector<1x1x512xf32>
    %35 = vector.broadcast %34 : vector<1x1x512xf32> to vector<1x16x512xf32>
    %36 = arith.mulf %31, %35 : vector<1x16x512xf32>
    %37 = arith.addf %30, %36 : vector<1x16x512xf32>
    %38 = vector.extract_strided_slice %7 {offsets = [0, 1, 0], sizes = [1, 16, 512], strides = [1, 1, 1]} : vector<1x18x512xf32> to vector<1x16x512xf32>
    %39 = vector.extract_strided_slice %1 {offsets = [1, 1, 0], sizes = [1, 1, 512], strides = [1, 1, 1]} : vector<3x3x512xf32> to vector<1x1x512xf32>
    %40 = vector.shape_cast %39 : vector<1x1x512xf32> to vector<512xf32>
    %41 = vector.shape_cast %40 : vector<512xf32> to vector<1x1x512xf32>
    %42 = vector.broadcast %41 : vector<1x1x512xf32> to vector<1x16x512xf32>
    %43 = arith.mulf %38, %42 : vector<1x16x512xf32>
    %44 = arith.addf %37, %43 : vector<1x16x512xf32>
    %45 = vector.extract_strided_slice %9 {offsets = [0, 1, 0], sizes = [1, 16, 512], strides = [1, 1, 1]} : vector<1x18x512xf32> to vector<1x16x512xf32>
    %46 = vector.extract_strided_slice %1 {offsets = [1, 2, 0], sizes = [1, 1, 512], strides = [1, 1, 1]} : vector<3x3x512xf32> to vector<1x1x512xf32>
    %47 = vector.shape_cast %46 : vector<1x1x512xf32> to vector<512xf32>
    %48 = vector.shape_cast %47 : vector<512xf32> to vector<1x1x512xf32>
    %49 = vector.broadcast %48 : vector<1x1x512xf32> to vector<1x16x512xf32>
    %50 = arith.mulf %45, %49 : vector<1x16x512xf32>
    %51 = arith.addf %44, %50 : vector<1x16x512xf32>
    %52 = vector.extract_strided_slice %8 {offsets = [0, 2, 0], sizes = [1, 16, 512], strides = [1, 1, 1]} : vector<1x18x512xf32> to vector<1x16x512xf32>
    %53 = vector.extract_strided_slice %1 {offsets = [2, 0, 0], sizes = [1, 1, 512], strides = [1, 1, 1]} : vector<3x3x512xf32> to vector<1x1x512xf32>
    %54 = vector.shape_cast %53 : vector<1x1x512xf32> to vector<512xf32>
    %55 = vector.shape_cast %54 : vector<512xf32> to vector<1x1x512xf32>
    %56 = vector.broadcast %55 : vector<1x1x512xf32> to vector<1x16x512xf32>
    %57 = arith.mulf %52, %56 : vector<1x16x512xf32>
    %58 = arith.addf %51, %57 : vector<1x16x512xf32>
    %59 = vector.extract_strided_slice %7 {offsets = [0, 2, 0], sizes = [1, 16, 512], strides = [1, 1, 1]} : vector<1x18x512xf32> to vector<1x16x512xf32>
    %60 = vector.extract_strided_slice %1 {offsets = [2, 1, 0], sizes = [1, 1, 512], strides = [1, 1, 1]} : vector<3x3x512xf32> to vector<1x1x512xf32>
    %61 = vector.shape_cast %60 : vector<1x1x512xf32> to vector<512xf32>
    %62 = vector.shape_cast %61 : vector<512xf32> to vector<1x1x512xf32>
    %63 = vector.broadcast %62 : vector<1x1x512xf32> to vector<1x16x512xf32>
    %64 = arith.mulf %59, %63 : vector<1x16x512xf32>
    %65 = arith.addf %58, %64 : vector<1x16x512xf32>
    %66 = vector.extract_strided_slice %9 {offsets = [0, 2, 0], sizes = [1, 16, 512], strides = [1, 1, 1]} : vector<1x18x512xf32> to vector<1x16x512xf32>
    %67 = vector.extract_strided_slice %1 {offsets = [2, 2, 0], sizes = [1, 1, 512], strides = [1, 1, 1]} : vector<3x3x512xf32> to vector<1x1x512xf32>
    %68 = vector.shape_cast %67 : vector<1x1x512xf32> to vector<512xf32>
    %69 = vector.shape_cast %68 : vector<512xf32> to vector<1x1x512xf32>
    %70 = vector.broadcast %69 : vector<1x1x512xf32> to vector<1x16x512xf32>
    %71 = arith.mulf %66, %70 : vector<1x16x512xf32>
    %72 = arith.addf %65, %71 : vector<1x16x512xf32>
    %c0_7 = arith.constant 0 : index
    %c0_8 = arith.constant 0 : index
    %c0_9 = arith.constant 0 : index
    %73 = vector.load %arg4[%c0_7, %c0_8, %c0_9] : memref<1x16x512xf32, #tpu.memory_space<vmem>>, vector<1x16x512xf32>
    tpu.vector_store %arg4[%c0_7, %c0_8, %c0_9], %72 {strides = array<i32>} : memref<1x16x512xf32, #tpu.memory_space<vmem>>, vector<1x16x512xf32>,
    return
  }
  func.func @transform_0(%arg0: i32) -> (i32, i32, i32) {
    %c0_i32 = arith.constant 0 : i32
    %c0_i32_0 = arith.constant 0 : i32
    %c0_i32_1 = arith.constant 0 : i32
    return %arg0, %c0_i32, %c0_i32_0 : i32, i32, i32
  }
  func.func @transform_1(%arg0: i32) -> (i32, i32, i32) {
    %c0_i32 = arith.constant 0 : i32
    %c0_i32_0 = arith.constant 0 : i32
    %c0_i32_1 = arith.constant 0 : i32
    %c0_i32_2 = arith.constant 0 : i32
    return %c0_i32, %c0_i32_0, %c0_i32_1 : i32, i32, i32
  }
  func.func @transform_2(%arg0: i32) -> (i32, i32) {
    %c0_i32 = arith.constant 0 : i32
    %c0_i32_0 = arith.constant 0 : i32
    %c0_i32_1 = arith.constant 0 : i32
    return %c0_i32, %c0_i32_0 : i32, i32
  }
  func.func @transform_3(%arg0: i32) -> (i32, i32, i32) {
    %c0_i32 = arith.constant 0 : i32
    %c0_i32_0 = arith.constant 0 : i32
    %c0_i32_1 = arith.constant 0 : i32
    return %arg0, %c0_i32, %c0_i32_0 : i32, i32, i32
  }
}

</mosaic_0001>

<llo_original>
// kernel: tpu_custom_call.1
$region0: #{tpu_custom_call.1}
  #allocation0 [shape = 'u32[]', space=smem, size = 0x4, offset = 0x4, fixed_abs, tag = 'smem constant byte address 0x4 - core index']
  #allocation1 [shape = 'u32[144,128]{1,0:T(1,128)}', space=vmem, size = 0x12000, scoped, tag = 'internal scratch']
  %s0 = inlined_call_operand.hbm [shape: f32[2,16,512], index: 0, kind: input, shape index: {}]
  %s1 = inlined_call_operand.hbm [shape: f32[3,3,512], index: 1, kind: input, shape index: {}]
  %s2 = inlined_call_operand.vmem [shape: f32[1,512], index: 2, kind: input, shape index: {}]
  %s3 = inlined_call_operand.hbm [shape: f32[2,16,512], index: 3, kind: output, shape index: {}]
  %s4 = sld [smem:[#allocation0]]
  $region53: #{tpu_custom_call.1} parent=0
    _
  %s6 = ssub.s32 1, %s4
  %s7 = scalar_select 0, %s6, %s4
  $region1: #{tpu_custom_call.1} parent=0
    #allocation2 [shape = 'u8[65536]{0}', space=vmem, size = 0x10000, scoped, tag = 'input window, operand 0']
    #allocation3 [shape = 's32[2]{0}', space=sflag, size = 0x8, scoped, tag = 'scoped memory for tpu_custom_call.1']
    #allocation4 [shape = 's32[2]{0}', space=sflag, size = 0x8, scoped, tag = 'scoped memory for tpu_custom_call.1']
    #allocation5 [shape = 'u8[24576]{0}', space=vmem, size = 0x6000, scoped, tag = 'input window, operand 1, single buffered']
    #allocation6 [shape = 's32[1]{0}', space=sflag, size = 0x4, scoped, tag = 'scoped memory for tpu_custom_call.1']
    #allocation7 [shape = 'u8[65536]{0}', space=vmem, size = 0x10000, scoped, tag = 'output window, operand 0']
    %8 = vsyncpa [#allocation3], 0
    %s9 = scalar_lea.sflag [#allocation3], 1
    %10 = vsyncpa %s9, 0
    %11 = vsyncpa [#allocation6], 0
    %12 = vsyncpa [#allocation4], 0
    %s13 = scalar_lea.sflag [#allocation4], 1
    %14 = vsyncpa %s13, 0
    loop: start=0, step=1, limit=4
    $region2: #{tpu_custom_call.1} parent=1 // loop_pre_header
      _
    $region3: #{tpu_custom_call.1} parent=1 // loop_header
      %s16 = sphi 0, %s20
      %p17 = scmp.ge.s32.totalorder %s16, 4
      %s26 = sphi 0, %s28
      %s29 = sphi 0, %s26
      %s30 = sphi 0, %s29
      %s46 = sphi 0, %s30
      %s50 = sphi 0, %s50
      %s52 = sphi 0, %s50
      %s53 = sphi 0, %s52
      %s67 = sphi 0, %s53
      %s71 = sphi 0, %s71
      %s73 = sphi 0, %s71
      %s74 = sphi 0, %s73
      %s88 = sphi 0, %s74
      %s94 = sphi 0, %s96
      %s97 = sphi 0, %s94
      %s98 = sphi 0, %s97
      %s114 = sphi 0, %s98
    $region4: #{tpu_custom_call.1} parent=1 // loop_header_branch
      %19 = sbr.rel (%p17) target = $region8
    $region5: #{tpu_custom_call.1} parent=1 // loop_body
      %s21 = ssub.s32 %s16, 1
      %s22 = ssub.s32 %s16, 2
      %s23 = sadd.s32 %s16, 1
      %s24 = ssub.s32 %s16, %s23
      %p25 = scmp.eq.s32.totalorder %s24, 0
      %s27 = sadd.s32 %s26, 1
      %s28 = scalar_select %p25, %s26, %s27
      %p31 = pneg %p25
      %p32 = scmp.eq.s32.totalorder %s16, 1
      %p33 = por %p31, %p32
      %p34 = scmp.ne.s32.totalorder %s26, %s29
      %p35 = scmp.eq.s32.totalorder %s16, 0
      %p36 = por %p34, %p35
      %p37 = scmp.ne.s32.totalorder %s26, %s29
      %p38 = scmp.eq.s32.totalorder %s21, 1
      %p39 = por %p37, %p38
      %p40 = scmp.ne.s32.totalorder %s29, %s30
      %p41 = scmp.eq.s32.totalorder %s21, 0
      %p42 = por %p40, %p41
      %p43 = scmp.ne.s32.totalorder %s29, %s30
      %p44 = scmp.eq.s32.totalorder %s22, 1
      %p45 = por %p43, %p44
      %p47 = scmp.ne.s32.totalorder %s30, %s46
      %p48 = scmp.eq.s32.totalorder %s22, 0
      %p49 = por %p47, %p48
      %s51 = sadd.s32 %s50, 1
      %p54 = scmp.eq.s32.totalorder %s16, 1
      %p55 = scmp.ne.s32.totalorder %s50, %s52
      %p56 = scmp.eq.s32.totalorder %s16, 0
      %p57 = por %p55, %p56
      %p58 = scmp.ne.s32.totalorder %s50, %s52
      %p59 = scmp.eq.s32.totalorder %s21, 1
      %p60 = por %p58, %p59
      %p61 = scmp.ne.s32.totalorder %s52, %s53
      %p62 = scmp.eq.s32.totalorder %s21, 0
      %p63 = por %p61, %p62
      %p64 = scmp.ne.s32.totalorder %s52, %s53
      %p65 = scmp.eq.s32.totalorder %s22, 1
      %p66 = por %p64, %p65
      %p68 = scmp.ne.s32.totalorder %s53, %s67
      %p69 = scmp.eq.s32.totalorder %s22, 0
      %p70 = por %p68, %p69
      %s72 = sadd.s32 %s71, 1
      %p75 = scmp.eq.s32.totalorder %s16, 1
      %p76 = scmp.ne.s32.totalorder %s71, %s73
      %p77 = scmp.eq.s32.totalorder %s16, 0
      %p78 = por %p76, %p77
      %p79 = scmp.ne.s32.totalorder %s71, %s73
      %p80 = scmp.eq.s32.totalorder %s21, 1
      %p81 = por %p79, %p80
      %p82 = scmp.ne.s32.totalorder %s73, %s74
      %p83 = scmp.eq.s32.totalorder %s21, 0
      %p84 = por %p82, %p83
      %p85 = scmp.ne.s32.totalorder %s73, %s74
      %p86 = scmp.eq.s32.totalorder %s22, 1
      %p87 = por %p85, %p86
      %p89 = scmp.ne.s32.totalorder %s74, %s88
      %p90 = scmp.eq.s32.totalorder %s22, 0
      %p91 = por %p89, %p90
      %s92 = ssub.s32 %s16, %s23
      %p93 = scmp.eq.s32.totalorder %s92, 0
      %s95 = sadd.s32 %s94, 1
      %s96 = scalar_select %p93, %s94, %s95
      %p99 = pneg %p93
      %p100 = scmp.eq.s32.totalorder %s16, 1
      %p101 = por %p99, %p100
      %p102 = scmp.ne.s32.totalorder %s94, %s97
      %p103 = scmp.eq.s32.totalorder %s16, 0
      %p104 = por %p102, %p103
      %p105 = scmp.ne.s32.totalorder %s94, %s97
      %p106 = scmp.eq.s32.totalorder %s21, 1
      %p107 = por %p105, %p106
      %p108 = scmp.ne.s32.totalorder %s97, %s98
      %p109 = scmp.eq.s32.totalorder %s21, 0
      %p110 = por %p108, %p109
      %p111 = scmp.ne.s32.totalorder %s97, %s98
      %p112 = scmp.eq.s32.totalorder %s22, 1
      %p113 = por %p111, %p112
      %p115 = scmp.ne.s32.totalorder %s98, %s114
      %p116 = scmp.eq.s32.totalorder %s22, 0
      %p117 = por %p115, %p116
      %p118 = scmp.le.s32.totalorder 1, %s16
      %p119 = scmp.lt.s32.totalorder %s16, 3
      %p120 = pnand %p118, %p119
      %p121 = pneg %p120
      // Predicated region
      $region9: #{tpu_custom_call.1} parent=5 // pred_check
        _
      $region10: #{tpu_custom_call.1} parent=5 // pred_check_branch
        %123 = sbr.rel (%p120) target = $region12
      $region11: #{tpu_custom_call.1} parent=5 // pred_region
        %s124 = ssub.s32 %s16, 1
        // Predicated region
        $region13: #{tpu_custom_call.1} parent=11 // pred_check
          %p125 = pneg %p63
        $region14: #{tpu_custom_call.1} parent=11 // pred_check_branch
          %127 = sbr.rel (%p125) target = $region16
        $region15: #{tpu_custom_call.1} parent=11 // pred_region
          %s129 = ssub.s32 768, 768
          %130 = vsyncadd [#allocation6], %s129
          %s131 = sshll.u32 [#allocation5], 4
          %s132 = int_to_ptr.vmem [resolvable:$true] %s131
          %137 = dma.hbm_to_vmem [thread:$0]  %s1, 768, %s132, [#allocation6], 256, 256, 16
        $region16: #{tpu_custom_call.1} parent=11 // pred_fallthru
          _
        // Predicated region
        $region17: #{tpu_custom_call.1} parent=11 // pred_check
          %p138 = pneg %p84
        $region18: #{tpu_custom_call.1} parent=11 // pred_check_branch
          %140 = sbr.rel (%p138) target = $region20
        $region19: #{tpu_custom_call.1} parent=11 // pred_region
          _
        $region20: #{tpu_custom_call.1} parent=11 // pred_fallthru
          _
      $region12: #{tpu_custom_call.1} parent=5 // pred_fallthru
        _
      %p141 = scmp.lt.s32.totalorder %s16, 2
      // Predicated region
      $region21: #{tpu_custom_call.1} parent=5 // pred_check
        %p142 = pneg %p141
      $region22: #{tpu_custom_call.1} parent=5 // pred_check_branch
        %144 = sbr.rel (%p142) target = $region24
      $region23: #{tpu_custom_call.1} parent=5 // pred_region
        // Predicated region
        $region25: #{tpu_custom_call.1} parent=23 // pred_check
          %p145 = pneg %p36
        $region26: #{tpu_custom_call.1} parent=23 // pred_check_branch
          %147 = sbr.rel (%p145) target = $region28
        $region27: #{tpu_custom_call.1} parent=23 // pred_region
          %s148 = sand.u32 %s26, 1
          %s149 = scalar_lea.sflag [#allocation3], %s148
          %s150 = sand.u32 %s26, 1
          %s151 = smul.addr %s150, 64
          %s152 = scalar_lea.vmem [#allocation2], %s151
          %s154 = ssub.s32 1024, 1024
          %155 = vsyncadd %s149, %s154
          %s156 = smul.addr %s16, 8
          %s157 = smul.addr %s156, 128
          %s158 = scalar_lea.hbm %s0, %s157
          %s159 = sshll.u32 %s152, 4
          %s160 = int_to_ptr.vmem [resolvable:$true] %s159
          %165 = dma.hbm_to_vmem [thread:$0]  %s158, 1024, %s160, %s149, 512, 512, 32
        $region28: #{tpu_custom_call.1} parent=23 // pred_fallthru
          _
      $region24: #{tpu_custom_call.1} parent=5 // pred_fallthru
        _
      %p166 = scmp.le.s32.totalorder 1, %s16
      %p167 = scmp.lt.s32.totalorder %s16, 3
      %p168 = pnand %p166, %p167
      %p169 = pneg %p168
      // Predicated region
      $region29: #{tpu_custom_call.1} parent=5 // pred_check
        _
      $region30: #{tpu_custom_call.1} parent=5 // pred_check_branch
        %171 = sbr.rel (%p168) target = $region32
      $region31: #{tpu_custom_call.1} parent=5 // pred_region
        %s172 = ssub.s32 %s16, 1
        %s173 = sand.u32 %s29, 1
        %s174 = scalar_lea.sflag [#allocation3], %s173
        %s175 = sand.u32 %s29, 1
        %s176 = smul.addr %s175, 64
        %s177 = scalar_lea.vmem [#allocation2], %s176
        // Predicated region
        $region33: #{tpu_custom_call.1} parent=31 // pred_check
          %p178 = pneg %p42
        $region34: #{tpu_custom_call.1} parent=31 // pred_check_branch
          %180 = sbr.rel (%p178) target = $region36
        $region35: #{tpu_custom_call.1} parent=31 // pred_region
          %181 = dma.done %s174, 1024
        $region36: #{tpu_custom_call.1} parent=31 // pred_fallthru
          _
        // Predicated region
        $region37: #{tpu_custom_call.1} parent=31 // pred_check
          %p182 = pneg %p63
        $region38: #{tpu_custom_call.1} parent=31 // pred_check_branch
          %184 = sbr.rel (%p182) target = $region40
        $region39: #{tpu_custom_call.1} parent=31 // pred_region
          %185 = dma.done [#allocation6], 768
        $region40: #{tpu_custom_call.1} parent=31 // pred_fallthru
          _
        %s186 = sand.u32 %s29, 1
        %s187 = scalar_lea.sflag [#allocation3], %s186
        %s188 = sand.u32 %s29, 1
        %s189 = smul.addr %s188, 64
        %s190 = scalar_lea.vmem [#allocation2], %s189
        %p191 = pneg %p42
        %p192 = pneg %p39
        %p193 = pneg %p63
        %p194 = pneg %p60
        %p195 = pneg %p84
        %p196 = pneg %p81
        %p197 = pneg %p110
        %p198 = pneg %p107
        %s199 = sand.u32 %s97, 1
        %s200 = scalar_lea.sflag [#allocation4], %s199
        %s201 = sand.u32 %s97, 1
        %s202 = smul.addr %s201, 64
        %s203 = scalar_lea.vmem [#allocation7], %s202
        %v204 = vld [vmem:[%s177] sm:$0xff]
        %v205 = vld [vmem:[%s177 + $0x8] sm:$0xff]
        %v206 = vld [vmem:[%s177 + $0x10] sm:$0xff]
        %v207 = vld [vmem:[%s177 + $0x18] sm:$0xff]
        %v208 = vld [vmem:[%s177 + $0x20] sm:$0xff]
        %v209 = vld [vmem:[%s177 + $0x28] sm:$0xff]
        %v210 = vld [vmem:[%s177 + $0x30] sm:$0xff]
        %v211 = vld [vmem:[%s177 + $0x38] sm:$0xff]
        %v212 = vld [vmem:[#allocation5] sm:$0x77]
        %v213 = vld [vmem:[#allocation5 + $0x8] sm:$0x77]
        %v214 = vld [vmem:[#allocation5 + $0x10] sm:$0x77]
        %v215 = vld [vmem:[#allocation5 + $0x18] sm:$0x77]
        %v216 = vld [vmem:[#allocation5 + $0x20] sm:$0x77]
        %v217 = vld [vmem:[#allocation5 + $0x28] sm:$0x77]
        %v218 = vld [vmem:[%s2] sm:$0xf]
        %v220 = vlaneseq
        %v221 = vshrl.u32 %v220, 7
        %v222 = vsub.s32 0, %v221
        %v223 = vrot.slane %v218, %v222
        %v224 = vlaneseq
        %v225 = vshrl.u32 %v224, 7
        %v226 = vsub.s32 1, %v225
        %v227 = vrot.slane %v218, %v226
        %v228 = vlaneseq
        %v229 = vshrl.u32 %v228, 7
        %v230 = vsub.s32 2, %v229
        %v231 = vrot.slane %v218, %v230
        %v232 = vlaneseq
        %v233 = vshrl.u32 %v232, 7
        %v234 = vsub.s32 3, %v233
        %v235 = vrot.slane %v218, %v234
        %vm248 = vcmask 1040384
        %v249 = vrot.slane %v204, 7
        %v250 = vrot.slane %v205, 7
        %v251 = vrot.slane %v206, 7
        %v252 = vrot.slane %v207, 7
        %v253 = vrot.slane %v208, 7
        %v254 = vsel %vm248, %v249, %v253
        %v255 = vrot.slane %v209, 7
        %v256 = vsel %vm248, %v250, %v255
        %v257 = vrot.slane %v210, 7
        %v258 = vsel %vm248, %v251, %v257
        %v259 = vrot.slane %v211, 7
        %v260 = vsel %vm248, %v252, %v259
        %v273 = vsel %vm248, 0.0, %v249
        %v274 = vsel %vm248, 0.0, %v250
        %v275 = vsel %vm248, 0.0, %v251
        %v276 = vsel %vm248, 0.0, %v252
        %v277 = vsel %vm248, %v253, 0.0
        %v278 = vsel %vm248, %v255, 0.0
        %v279 = vsel %vm248, %v257, 0.0
        %v280 = vsel %vm248, %v259, 0.0
        %281 = vrot.lane.b32.xlu0 %v273, 32
        %v282 = vpop.permute.xlu0 %281
        %283 = vrot.lane.b32.xlu0 %v254, 32
        %v284 = vpop.permute.xlu0 %283
        %285 = vrot.lane.b32.xlu0 %v277, 32
        %v286 = vpop.permute.xlu0 %285
        %287 = vrot.lane.b32.xlu0 %v274, 32
        %v288 = vpop.permute.xlu0 %287
        %289 = vrot.lane.b32.xlu0 %v256, 32
        %v290 = vpop.permute.xlu0 %289
        %291 = vrot.lane.b32.xlu0 %v278, 32
        %v292 = vpop.permute.xlu0 %291
        %293 = vrot.lane.b32.xlu0 %v275, 32
        %v294 = vpop.permute.xlu0 %293
        %295 = vrot.lane.b32.xlu0 %v258, 32
        %v296 = vpop.permute.xlu0 %295
        %297 = vrot.lane.b32.xlu0 %v279, 32
        %v298 = vpop.permute.xlu0 %297
        %299 = vrot.lane.b32.xlu0 %v276, 32
        %v300 = vpop.permute.xlu0 %299
        %301 = vrot.lane.b32.xlu0 %v260, 32
        %v302 = vpop.permute.xlu0 %301
        %303 = vrot.lane.b32.xlu0 %v280, 32
        %v304 = vpop.permute.xlu0 %303
        %v305 = vlaneseq
        %v306 = vand.u32 %v305, 127
        %vm307 = vcmp.lt.s32.totalorder %v306, 32
        %v308 = vsel %vm307, %v294, %v300
        %v309 = vsel %vm307, %v296, %v302
        %v310 = vsel %vm307, %v298, %v304
        %v311 = vsel %vm307, %v288, %v294
        %v312 = vsel %vm307, %v290, %v296
        %v313 = vsel %vm307, %v292, %v298
        %v314 = vsel %vm307, %v282, %v288
        %v315 = vsel %vm307, %v284, %v290
        %v316 = vsel %vm307, %v286, %v292
        %v317 = vsel %vm307, %v300, %v282
        %v318 = vsel %vm307, %v302, %v284
        %v319 = vsel %vm307, %v304, %v286
        %320 = vrot.lane.b32.xlu0 %v273, 96
        %v321 = vpop.permute.xlu0 %320
        %322 = vrot.lane.b32.xlu0 %v254, 96
        %v323 = vpop.permute.xlu0 %322
        %324 = vrot.lane.b32.xlu0 %v277, 96
        %v325 = vpop.permute.xlu0 %324
        %326 = vrot.lane.b32.xlu0 %v274, 96
        %v327 = vpop.permute.xlu0 %326
        %328 = vrot.lane.b32.xlu0 %v256, 96
        %v329 = vpop.permute.xlu0 %328
        %330 = vrot.lane.b32.xlu0 %v278, 96
        %v331 = vpop.permute.xlu0 %330
        %332 = vrot.lane.b32.xlu0 %v275, 96
        %v333 = vpop.permute.xlu0 %332
        %334 = vrot.lane.b32.xlu0 %v258, 96
        %v335 = vpop.permute.xlu0 %334
        %336 = vrot.lane.b32.xlu0 %v279, 96
        %v337 = vpop.permute.xlu0 %336
        %338 = vrot.lane.b32.xlu0 %v276, 96
        %v339 = vpop.permute.xlu0 %338
        %340 = vrot.lane.b32.xlu0 %v260, 96
        %v341 = vpop.permute.xlu0 %340
        %342 = vrot.lane.b32.xlu0 %v280, 96
        %v343 = vpop.permute.xlu0 %342
        %vm344 = vcmp.lt.s32.totalorder %v306, 96
        %v345 = vsel %vm344, %v333, %v339
        %v346 = vsel %vm344, %v335, %v341
        %v347 = vsel %vm344, %v337, %v343
        %v348 = vsel %vm344, %v327, %v333
        %v349 = vsel %vm344, %v329, %v335
        %v350 = vsel %vm344, %v331, %v337
        %v351 = vsel %vm344, %v321, %v327
        %v352 = vsel %vm344, %v323, %v329
        %v353 = vsel %vm344, %v325, %v331
        %v354 = vsel %vm344, %v339, %v321
        %v355 = vsel %vm344, %v341, %v323
        %v356 = vsel %vm344, %v343, %v325
        %v359 = vlaneseq
        %v360 = vshrl.u32 %v359, 7
        %v361 = vsub.s32 0, %v360
        %v362 = vrot.slane %v212, %v361
        %v363 = vlaneseq
        %v364 = vshrl.u32 %v363, 7
        %v365 = vsub.s32 4, %v364
        %v366 = vrot.slane %v212, %v365
        %v367 = vlaneseq
        %v368 = vshrl.u32 %v367, 7
        %v369 = vsub.s32 0, %v368
        %v370 = vrot.slane %v213, %v369
        %v371 = vlaneseq
        %v372 = vshrl.u32 %v371, 7
        %v373 = vsub.s32 4, %v372
        %v374 = vrot.slane %v213, %v373
        %v379 = vlaneseq
        %v380 = vshrl.u32 %v379, 7
        %v381 = vsub.s32 0, %v380
        %v382 = vrot.slane %v362, %v381
        %v383 = vlaneseq
        %v384 = vshrl.u32 %v383, 7
        %v385 = vsub.s32 0, %v384
        %v386 = vrot.slane %v366, %v385
        %v387 = vlaneseq
        %v388 = vshrl.u32 %v387, 7
        %v389 = vsub.s32 0, %v388
        %v390 = vrot.slane %v370, %v389
        %v391 = vlaneseq
        %v392 = vshrl.u32 %v391, 7
        %v393 = vsub.s32 0, %v392
        %v394 = vrot.slane %v374, %v393
        %v395 = vmul.f32 %v317, %v382
        %v396 = vmul.f32 %v314, %v386
        %v397 = vmul.f32 %v311, %v390
        %v398 = vmul.f32 %v308, %v394
        %v399 = vmul.f32 %v318, %v382
        %v400 = vmul.f32 %v315, %v386
        %v401 = vmul.f32 %v312, %v390
        %v402 = vmul.f32 %v309, %v394
        %v403 = vadd.f32 %v223, %v395
        %v404 = vadd.f32 %v227, %v396
        %v405 = vadd.f32 %v231, %v397
        %v406 = vadd.f32 %v235, %v398
        %v407 = vadd.f32 %v223, %v399
        %v408 = vadd.f32 %v227, %v400
        %v409 = vadd.f32 %v231, %v401
        %v410 = vadd.f32 %v235, %v402
        %v411 = vlaneseq
        %v412 = vshrl.u32 %v411, 7
        %v413 = vsub.s32 1, %v412
        %v414 = vrot.slane %v212, %v413
        %v415 = vlaneseq
        %v416 = vshrl.u32 %v415, 7
        %v417 = vsub.s32 5, %v416
        %v418 = vrot.slane %v212, %v417
        %v419 = vlaneseq
        %v420 = vshrl.u32 %v419, 7
        %v421 = vsub.s32 1, %v420
        %v422 = vrot.slane %v213, %v421
        %v423 = vlaneseq
        %v424 = vshrl.u32 %v423, 7
        %v425 = vsub.s32 5, %v424
        %v426 = vrot.slane %v213, %v425
        %v431 = vlaneseq
        %v432 = vshrl.u32 %v431, 7
        %v433 = vsub.s32 1, %v432
        %v434 = vrot.slane %v414, %v433
        %v435 = vlaneseq
        %v436 = vshrl.u32 %v435, 7
        %v437 = vsub.s32 1, %v436
        %v438 = vrot.slane %v418, %v437
        %v439 = vlaneseq
        %v440 = vshrl.u32 %v439, 7
        %v441 = vsub.s32 1, %v440
        %v442 = vrot.slane %v422, %v441
        %v443 = vlaneseq
        %v444 = vshrl.u32 %v443, 7
        %v445 = vsub.s32 1, %v444
        %v446 = vrot.slane %v426, %v445
        %v447 = vmul.f32 %v273, %v434
        %v448 = vmul.f32 %v274, %v438
        %v449 = vmul.f32 %v275, %v442
        %v450 = vmul.f32 %v276, %v446
        %v451 = vmul.f32 %v254, %v434
        %v452 = vmul.f32 %v256, %v438
        %v453 = vmul.f32 %v258, %v442
        %v454 = vmul.f32 %v260, %v446
        %v455 = vadd.f32 %v403, %v447
        %v456 = vadd.f32 %v404, %v448
        %v457 = vadd.f32 %v405, %v449
        %v458 = vadd.f32 %v406, %v450
        %v459 = vadd.f32 %v407, %v451
        %v460 = vadd.f32 %v408, %v452
        %v461 = vadd.f32 %v409, %v453
        %v462 = vadd.f32 %v410, %v454
        %v463 = vlaneseq
        %v464 = vshrl.u32 %v463, 7
        %v465 = vsub.s32 2, %v464
        %v466 = vrot.slane %v212, %v465
        %v467 = vlaneseq
        %v468 = vshrl.u32 %v467, 7
        %v469 = vsub.s32 6, %v468
        %v470 = vrot.slane %v212, %v469
        %v471 = vlaneseq
        %v472 = vshrl.u32 %v471, 7
        %v473 = vsub.s32 2, %v472
        %v474 = vrot.slane %v213, %v473
        %v475 = vlaneseq
        %v476 = vshrl.u32 %v475, 7
        %v477 = vsub.s32 6, %v476
        %v478 = vrot.slane %v213, %v477
        %v483 = vlaneseq
        %v484 = vshrl.u32 %v483, 7
        %v485 = vsub.s32 2, %v484
        %v486 = vrot.slane %v466, %v485
        %v487 = vlaneseq
        %v488 = vshrl.u32 %v487, 7
        %v489 = vsub.s32 2, %v488
        %v490 = vrot.slane %v470, %v489
        %v491 = vlaneseq
        %v492 = vshrl.u32 %v491, 7
        %v493 = vsub.s32 2, %v492
        %v494 = vrot.slane %v474, %v493
        %v495 = vlaneseq
        %v496 = vshrl.u32 %v495, 7
        %v497 = vsub.s32 2, %v496
        %v498 = vrot.slane %v478, %v497
        %v499 = vmul.f32 %v351, %v486
        %v500 = vmul.f32 %v348, %v490
        %v501 = vmul.f32 %v345, %v494
        %v502 = vmul.f32 %v354, %v498
        %v503 = vmul.f32 %v352, %v486
        %v504 = vmul.f32 %v349, %v490
        %v505 = vmul.f32 %v346, %v494
        %v506 = vmul.f32 %v355, %v498
        %v507 = vadd.f32 %v455, %v499
        %v508 = vadd.f32 %v456, %v500
        %v509 = vadd.f32 %v457, %v501
        %v510 = vadd.f32 %v458, %v502
        %v511 = vadd.f32 %v459, %v503
        %v512 = vadd.f32 %v460, %v504
        %v513 = vadd.f32 %v461, %v505
        %v514 = vadd.f32 %v462, %v506
        %v517 = vlaneseq
        %v518 = vshrl.u32 %v517, 7
        %v519 = vsub.s32 0, %v518
        %v520 = vrot.slane %v214, %v519
        %v521 = vlaneseq
        %v522 = vshrl.u32 %v521, 7
        %v523 = vsub.s32 4, %v522
        %v524 = vrot.slane %v214, %v523
        %v525 = vlaneseq
        %v526 = vshrl.u32 %v525, 7
        %v527 = vsub.s32 0, %v526
        %v528 = vrot.slane %v215, %v527
        %v529 = vlaneseq
        %v530 = vshrl.u32 %v529, 7
        %v531 = vsub.s32 4, %v530
        %v532 = vrot.slane %v215, %v531
        %v537 = vlaneseq
        %v538 = vshrl.u32 %v537, 7
        %v539 = vsub.s32 0, %v538
        %v540 = vrot.slane %v520, %v539
        %v541 = vlaneseq
        %v542 = vshrl.u32 %v541, 7
        %v543 = vsub.s32 0, %v542
        %v544 = vrot.slane %v524, %v543
        %v545 = vlaneseq
        %v546 = vshrl.u32 %v545, 7
        %v547 = vsub.s32 0, %v546
        %v548 = vrot.slane %v528, %v547
        %v549 = vlaneseq
        %v550 = vshrl.u32 %v549, 7
        %v551 = vsub.s32 0, %v550
        %v552 = vrot.slane %v532, %v551
        %v553 = vmul.f32 %v317, %v540
        %v554 = vmul.f32 %v314, %v544
        %v555 = vmul.f32 %v311, %v548
        %v556 = vmul.f32 %v308, %v552
        %v557 = vmul.f32 %v318, %v540
        %v558 = vmul.f32 %v315, %v544
        %v559 = vmul.f32 %v312, %v548
        %v560 = vmul.f32 %v309, %v552
        %v561 = vmul.f32 %v319, %v540
        %v562 = vmul.f32 %v316, %v544
        %v563 = vmul.f32 %v313, %v548
        %v564 = vmul.f32 %v310, %v552
        %vm577 = vcmask 1046528
        %v578 = vrot.slane %v553, 1
        %v579 = vrot.slane %v557, 1
        %v580 = vsel %vm577, %v578, %v579
        %v581 = vrot.slane %v554, 1
        %v582 = vrot.slane %v558, 1
        %v583 = vsel %vm577, %v581, %v582
        %v584 = vrot.slane %v555, 1
        %v585 = vrot.slane %v559, 1
        %v586 = vsel %vm577, %v584, %v585
        %v587 = vrot.slane %v556, 1
        %v588 = vrot.slane %v560, 1
        %v589 = vsel %vm577, %v587, %v588
        %v590 = vrot.slane %v561, 1
        %v591 = vsel %vm577, %v579, %v590
        %v592 = vrot.slane %v562, 1
        %v593 = vsel %vm577, %v582, %v592
        %v594 = vrot.slane %v563, 1
        %v595 = vsel %vm577, %v585, %v594
        %v596 = vrot.slane %v564, 1
        %v597 = vsel %vm577, %v588, %v596
        %v606 = vadd.f32 %v507, %v580
        %v607 = vadd.f32 %v508, %v583
        %v608 = vadd.f32 %v509, %v586
        %v609 = vadd.f32 %v510, %v589
        %v610 = vadd.f32 %v511, %v591
        %v611 = vadd.f32 %v512, %v593
        %v612 = vadd.f32 %v513, %v595
        %v613 = vadd.f32 %v514, %v597
        %v614 = vlaneseq
        %v615 = vshrl.u32 %v614, 7
        %v616 = vsub.s32 1, %v615
        %v617 = vrot.slane %v214, %v616
        %v618 = vlaneseq
        %v619 = vshrl.u32 %v618, 7
        %v620 = vsub.s32 5, %v619
        %v621 = vrot.slane %v214, %v620
        %v622 = vlaneseq
        %v623 = vshrl.u32 %v622, 7
        %v624 = vsub.s32 1, %v623
        %v625 = vrot.slane %v215, %v624
        %v626 = vlaneseq
        %v627 = vshrl.u32 %v626, 7
        %v628 = vsub.s32 5, %v627
        %v629 = vrot.slane %v215, %v628
        %v634 = vlaneseq
        %v635 = vshrl.u32 %v634, 7
        %v636 = vsub.s32 1, %v635
        %v637 = vrot.slane %v617, %v636
        %v638 = vlaneseq
        %v639 = vshrl.u32 %v638, 7
        %v640 = vsub.s32 1, %v639
        %v641 = vrot.slane %v621, %v640
        %v642 = vlaneseq
        %v643 = vshrl.u32 %v642, 7
        %v644 = vsub.s32 1, %v643
        %v645 = vrot.slane %v625, %v644
        %v646 = vlaneseq
        %v647 = vshrl.u32 %v646, 7
        %v648 = vsub.s32 1, %v647
        %v649 = vrot.slane %v629, %v648
        %v650 = vmul.f32 %v273, %v637
        %v651 = vmul.f32 %v274, %v641
        %v652 = vmul.f32 %v275, %v645
        %v653 = vmul.f32 %v276, %v649
        %v654 = vmul.f32 %v254, %v637
        %v655 = vmul.f32 %v256, %v641
        %v656 = vmul.f32 %v258, %v645
        %v657 = vmul.f32 %v260, %v649
        %v658 = vmul.f32 %v277, %v637
        %v659 = vmul.f32 %v278, %v641
        %v660 = vmul.f32 %v279, %v645
        %v661 = vmul.f32 %v280, %v649
        %v674 = vrot.slane %v650, 1
        %v675 = vrot.slane %v654, 1
        %v676 = vsel %vm577, %v674, %v675
        %v677 = vrot.slane %v651, 1
        %v678 = vrot.slane %v655, 1
        %v679 = vsel %vm577, %v677, %v678
        %v680 = vrot.slane %v652, 1
        %v681 = vrot.slane %v656, 1
        %v682 = vsel %vm577, %v680, %v681
        %v683 = vrot.slane %v653, 1
        %v684 = vrot.slane %v657, 1
        %v685 = vsel %vm577, %v683, %v684
        %v686 = vrot.slane %v658, 1
        %v687 = vsel %vm577, %v675, %v686
        %v688 = vrot.slane %v659, 1
        %v689 = vsel %vm577, %v678, %v688
        %v690 = vrot.slane %v660, 1
        %v691 = vsel %vm577, %v681, %v690
        %v692 = vrot.slane %v661, 1
        %v693 = vsel %vm577, %v684, %v692
        %v702 = vadd.f32 %v606, %v676
        %v703 = vadd.f32 %v607, %v679
        %v704 = vadd.f32 %v608, %v682
        %v705 = vadd.f32 %v609, %v685
        %v706 = vadd.f32 %v610, %v687
        %v707 = vadd.f32 %v611, %v689
        %v708 = vadd.f32 %v612, %v691
        %v709 = vadd.f32 %v613, %v693
        %v710 = vlaneseq
        %v711 = vshrl.u32 %v710, 7
        %v712 = vsub.s32 2, %v711
        %v713 = vrot.slane %v214, %v712
        %v714 = vlaneseq
        %v715 = vshrl.u32 %v714, 7
        %v716 = vsub.s32 6, %v715
        %v717 = vrot.slane %v214, %v716
        %v718 = vlaneseq
        %v719 = vshrl.u32 %v718, 7
        %v720 = vsub.s32 2, %v719
        %v721 = vrot.slane %v215, %v720
        %v722 = vlaneseq
        %v723 = vshrl.u32 %v722, 7
        %v724 = vsub.s32 6, %v723
        %v725 = vrot.slane %v215, %v724
        %v730 = vlaneseq
        %v731 = vshrl.u32 %v730, 7
        %v732 = vsub.s32 2, %v731
        %v733 = vrot.slane %v713, %v732
        %v734 = vlaneseq
        %v735 = vshrl.u32 %v734, 7
        %v736 = vsub.s32 2, %v735
        %v737 = vrot.slane %v717, %v736
        %v738 = vlaneseq
        %v739 = vshrl.u32 %v738, 7
        %v740 = vsub.s32 2, %v739
        %v741 = vrot.slane %v721, %v740
        %v742 = vlaneseq
        %v743 = vshrl.u32 %v742, 7
        %v744 = vsub.s32 2, %v743
        %v745 = vrot.slane %v725, %v744
        %v746 = vmul.f32 %v351, %v733
        %v747 = vmul.f32 %v348, %v737
        %v748 = vmul.f32 %v345, %v741
        %v749 = vmul.f32 %v354, %v745
        %v750 = vmul.f32 %v352, %v733
        %v751 = vmul.f32 %v349, %v737
        %v752 = vmul.f32 %v346, %v741
        %v753 = vmul.f32 %v355, %v745
        %v754 = vmul.f32 %v353, %v733
        %v755 = vmul.f32 %v350, %v737
        %v756 = vmul.f32 %v347, %v741
        %v757 = vmul.f32 %v356, %v745
        %v770 = vrot.slane %v746, 1
        %v771 = vrot.slane %v750, 1
        %v772 = vsel %vm577, %v770, %v771
        %v773 = vrot.slane %v747, 1
        %v774 = vrot.slane %v751, 1
        %v775 = vsel %vm577, %v773, %v774
        %v776 = vrot.slane %v748, 1
        %v777 = vrot.slane %v752, 1
        %v778 = vsel %vm577, %v776, %v777
        %v779 = vrot.slane %v749, 1
        %v780 = vrot.slane %v753, 1
        %v781 = vsel %vm577, %v779, %v780
        %v782 = vrot.slane %v754, 1
        %v783 = vsel %vm577, %v771, %v782
        %v784 = vrot.slane %v755, 1
        %v785 = vsel %vm577, %v774, %v784
        %v786 = vrot.slane %v756, 1
        %v787 = vsel %vm577, %v777, %v786
        %v788 = vrot.slane %v757, 1
        %v789 = vsel %vm577, %v780, %v788
        %v798 = vadd.f32 %v702, %v772
        %v799 = vadd.f32 %v703, %v775
        %v800 = vadd.f32 %v704, %v778
        %v801 = vadd.f32 %v705, %v781
        %v802 = vadd.f32 %v706, %v783
        %v803 = vadd.f32 %v707, %v785
        %v804 = vadd.f32 %v708, %v787
        %v805 = vadd.f32 %v709, %v789
        %v808 = vlaneseq
        %v809 = vshrl.u32 %v808, 7
        %v810 = vsub.s32 0, %v809
        %v811 = vrot.slane %v216, %v810
        %v812 = vlaneseq
        %v813 = vshrl.u32 %v812, 7
        %v814 = vsub.s32 4, %v813
        %v815 = vrot.slane %v216, %v814
        %v816 = vlaneseq
        %v817 = vshrl.u32 %v816, 7
        %v818 = vsub.s32 0, %v817
        %v819 = vrot.slane %v217, %v818
        %v820 = vlaneseq
        %v821 = vshrl.u32 %v820, 7
        %v822 = vsub.s32 4, %v821
        %v823 = vrot.slane %v217, %v822
        %v828 = vlaneseq
        %v829 = vshrl.u32 %v828, 7
        %v830 = vsub.s32 0, %v829
        %v831 = vrot.slane %v811, %v830
        %v832 = vlaneseq
        %v833 = vshrl.u32 %v832, 7
        %v834 = vsub.s32 0, %v833
        %v835 = vrot.slane %v815, %v834
        %v836 = vlaneseq
        %v837 = vshrl.u32 %v836, 7
        %v838 = vsub.s32 0, %v837
        %v839 = vrot.slane %v819, %v838
        %v840 = vlaneseq
        %v841 = vshrl.u32 %v840, 7
        %v842 = vsub.s32 0, %v841
        %v843 = vrot.slane %v823, %v842
        %v844 = vmul.f32 %v317, %v831
        %v845 = vmul.f32 %v314, %v835
        %v846 = vmul.f32 %v311, %v839
        %v847 = vmul.f32 %v308, %v843
        %v848 = vmul.f32 %v318, %v831
        %v849 = vmul.f32 %v315, %v835
        %v850 = vmul.f32 %v312, %v839
        %v851 = vmul.f32 %v309, %v843
        %v852 = vmul.f32 %v319, %v831
        %v853 = vmul.f32 %v316, %v835
        %v854 = vmul.f32 %v313, %v839
        %v855 = vmul.f32 %v310, %v843
        %vm868 = vcmask 1045504
        %v869 = vrot.slane %v844, 2
        %v870 = vrot.slane %v848, 2
        %v871 = vsel %vm868, %v869, %v870
        %v872 = vrot.slane %v845, 2
        %v873 = vrot.slane %v849, 2
        %v874 = vsel %vm868, %v872, %v873
        %v875 = vrot.slane %v846, 2
        %v876 = vrot.slane %v850, 2
        %v877 = vsel %vm868, %v875, %v876
        %v878 = vrot.slane %v847, 2
        %v879 = vrot.slane %v851, 2
        %v880 = vsel %vm868, %v878, %v879
        %v881 = vrot.slane %v852, 2
        %v882 = vsel %vm868, %v870, %v881
        %v883 = vrot.slane %v853, 2
        %v884 = vsel %vm868, %v873, %v883
        %v885 = vrot.slane %v854, 2
        %v886 = vsel %vm868, %v876, %v885
        %v887 = vrot.slane %v855, 2
        %v888 = vsel %vm868, %v879, %v887
        %v897 = vadd.f32 %v798, %v871
        %v898 = vadd.f32 %v799, %v874
        %v899 = vadd.f32 %v800, %v877
        %v900 = vadd.f32 %v801, %v880
        %v901 = vadd.f32 %v802, %v882
        %v902 = vadd.f32 %v803, %v884
        %v903 = vadd.f32 %v804, %v886
        %v904 = vadd.f32 %v805, %v888
        %v905 = vlaneseq
        %v906 = vshrl.u32 %v905, 7
        %v907 = vsub.s32 1, %v906
        %v908 = vrot.slane %v216, %v907
        %v909 = vlaneseq
        %v910 = vshrl.u32 %v909, 7
        %v911 = vsub.s32 5, %v910
        %v912 = vrot.slane %v216, %v911
        %v913 = vlaneseq
        %v914 = vshrl.u32 %v913, 7
        %v915 = vsub.s32 1, %v914
        %v916 = vrot.slane %v217, %v915
        %v917 = vlaneseq
        %v918 = vshrl.u32 %v917, 7
        %v919 = vsub.s32 5, %v918
        %v920 = vrot.slane %v217, %v919
        %v925 = vlaneseq
        %v926 = vshrl.u32 %v925, 7
        %v927 = vsub.s32 1, %v926
        %v928 = vrot.slane %v908, %v927
        %v929 = vlaneseq
        %v930 = vshrl.u32 %v929, 7
        %v931 = vsub.s32 1, %v930
        %v932 = vrot.slane %v912, %v931
        %v933 = vlaneseq
        %v934 = vshrl.u32 %v933, 7
        %v935 = vsub.s32 1, %v934
        %v936 = vrot.slane %v916, %v935
        %v937 = vlaneseq
        %v938 = vshrl.u32 %v937, 7
        %v939 = vsub.s32 1, %v938
        %v940 = vrot.slane %v920, %v939
        %v941 = vmul.f32 %v273, %v928
        %v942 = vmul.f32 %v274, %v932
        %v943 = vmul.f32 %v275, %v936
        %v944 = vmul.f32 %v276, %v940
        %v945 = vmul.f32 %v254, %v928
        %v946 = vmul.f32 %v256, %v932
        %v947 = vmul.f32 %v258, %v936
        %v948 = vmul.f32 %v260, %v940
        %v949 = vmul.f32 %v277, %v928
        %v950 = vmul.f32 %v278, %v932
        %v951 = vmul.f32 %v279, %v936
        %v952 = vmul.f32 %v280, %v940
        %v965 = vrot.slane %v941, 2
        %v966 = vrot.slane %v945, 2
        %v967 = vsel %vm868, %v965, %v966
        %v968 = vrot.slane %v942, 2
        %v969 = vrot.slane %v946, 2
        %v970 = vsel %vm868, %v968, %v969
        %v971 = vrot.slane %v943, 2
        %v972 = vrot.slane %v947, 2
        %v973 = vsel %vm868, %v971, %v972
        %v974 = vrot.slane %v944, 2
        %v975 = vrot.slane %v948, 2
        %v976 = vsel %vm868, %v974, %v975
        %v977 = vrot.slane %v949, 2
        %v978 = vsel %vm868, %v966, %v977
        %v979 = vrot.slane %v950, 2
        %v980 = vsel %vm868, %v969, %v979
        %v981 = vrot.slane %v951, 2
        %v982 = vsel %vm868, %v972, %v981
        %v983 = vrot.slane %v952, 2
        %v984 = vsel %vm868, %v975, %v983
        %v993 = vadd.f32 %v897, %v967
        %v994 = vadd.f32 %v898, %v970
        %v995 = vadd.f32 %v899, %v973
        %v996 = vadd.f32 %v900, %v976
        %v997 = vadd.f32 %v901, %v978
        %v998 = vadd.f32 %v902, %v980
        %v999 = vadd.f32 %v903, %v982
        %v1000 = vadd.f32 %v904, %v984
        %v1001 = vlaneseq
        %v1002 = vshrl.u32 %v1001, 7
        %v1003 = vsub.s32 2, %v1002
        %v1004 = vrot.slane %v216, %v1003
        %v1005 = vlaneseq
        %v1006 = vshrl.u32 %v1005, 7
        %v1007 = vsub.s32 6, %v1006
        %v1008 = vrot.slane %v216, %v1007
        %v1009 = vlaneseq
        %v1010 = vshrl.u32 %v1009, 7
        %v1011 = vsub.s32 2, %v1010
        %v1012 = vrot.slane %v217, %v1011
        %v1013 = vlaneseq
        %v1014 = vshrl.u32 %v1013, 7
        %v1015 = vsub.s32 6, %v1014
        %v1016 = vrot.slane %v217, %v1015
        %v1021 = vlaneseq
        %v1022 = vshrl.u32 %v1021, 7
        %v1023 = vsub.s32 2, %v1022
        %v1024 = vrot.slane %v1004, %v1023
        %v1025 = vlaneseq
        %v1026 = vshrl.u32 %v1025, 7
        %v1027 = vsub.s32 2, %v1026
        %v1028 = vrot.slane %v1008, %v1027
        %v1029 = vlaneseq
        %v1030 = vshrl.u32 %v1029, 7
        %v1031 = vsub.s32 2, %v1030
        %v1032 = vrot.slane %v1012, %v1031
        %v1033 = vlaneseq
        %v1034 = vshrl.u32 %v1033, 7
        %v1035 = vsub.s32 2, %v1034
        %v1036 = vrot.slane %v1016, %v1035
        %v1037 = vmul.f32 %v351, %v1024
        %v1038 = vmul.f32 %v348, %v1028
        %v1039 = vmul.f32 %v345, %v1032
        %v1040 = vmul.f32 %v354, %v1036
        %v1041 = vmul.f32 %v352, %v1024
        %v1042 = vmul.f32 %v349, %v1028
        %v1043 = vmul.f32 %v346, %v1032
        %v1044 = vmul.f32 %v355, %v1036
        %v1045 = vmul.f32 %v353, %v1024
        %v1046 = vmul.f32 %v350, %v1028
        %v1047 = vmul.f32 %v347, %v1032
        %v1048 = vmul.f32 %v356, %v1036
        %v1061 = vrot.slane %v1037, 2
        %v1062 = vrot.slane %v1041, 2
        %v1063 = vsel %vm868, %v1061, %v1062
        %v1064 = vrot.slane %v1038, 2
        %v1065 = vrot.slane %v1042, 2
        %v1066 = vsel %vm868, %v1064, %v1065
        %v1067 = vrot.slane %v1039, 2
        %v1068 = vrot.slane %v1043, 2
        %v1069 = vsel %vm868, %v1067, %v1068
        %v1070 = vrot.slane %v1040, 2
        %v1071 = vrot.slane %v1044, 2
        %v1072 = vsel %vm868, %v1070, %v1071
        %v1073 = vrot.slane %v1045, 2
        %v1074 = vsel %vm868, %v1062, %v1073
        %v1075 = vrot.slane %v1046, 2
        %v1076 = vsel %vm868, %v1065, %v1075
        %v1077 = vrot.slane %v1047, 2
        %v1078 = vsel %vm868, %v1068, %v1077
        %v1079 = vrot.slane %v1048, 2
        %v1080 = vsel %vm868, %v1071, %v1079
        %v1089 = vadd.f32 %v993, %v1063
        %v1090 = vadd.f32 %v994, %v1066
        %v1091 = vadd.f32 %v995, %v1069
        %v1092 = vadd.f32 %v996, %v1072
        %v1093 = vadd.f32 %v997, %v1074
        %v1094 = vadd.f32 %v998, %v1076
        %v1095 = vadd.f32 %v999, %v1078
        %v1096 = vadd.f32 %v1000, %v1080
        %1097 = vst [vmem:[%s203] sm:$0xff] %v1089
        %1098 = vst [vmem:[%s203 + $0x8] sm:$0xff] %v1090
        %1099 = vst [vmem:[%s203 + $0x10] sm:$0xff] %v1091
        %1100 = vst [vmem:[%s203 + $0x18] sm:$0xff] %v1092
        %1101 = vst [vmem:[%s203 + $0x20] sm:$0xff] %v1093
        %1102 = vst [vmem:[%s203 + $0x28] sm:$0xff] %v1094
        %1103 = vst [vmem:[%s203 + $0x30] sm:$0xff] %v1095
        %1104 = vst [vmem:[%s203 + $0x38] sm:$0xff] %v1096
        %s1105 = sand.u32 %s97, 1
        %s1106 = scalar_lea.sflag [#allocation4], %s1105
        %s1107 = sand.u32 %s97, 1
        %s1108 = smul.addr %s1107, 64
        %s1109 = scalar_lea.vmem [#allocation7], %s1108
        // Predicated region
        $region41: #{tpu_custom_call.1} parent=31 // pred_check
          %p1110 = pneg %p107
        $region42: #{tpu_custom_call.1} parent=31 // pred_check_branch
          %1112 = sbr.rel (%p1110) target = $region44
        $region43: #{tpu_custom_call.1} parent=31 // pred_region
          %s1114 = ssub.s32 1024, 1024
          %1115 = vsyncadd %s1106, %s1114
          %s1116 = smul.addr %s21, 8
          %s1117 = smul.addr %s1116, 128
          %s1118 = scalar_lea.hbm %s3, %s1117
          %s1119 = sshll.u32 %s1109, 4
          %s1120 = int_to_ptr.vmem [resolvable:$true] %s1119
          %1125 = dma.vmem_to_hbm [thread:$0]  %s1120, 1024, %s1118, %s1106, 512, 512, 32
        $region44: #{tpu_custom_call.1} parent=31 // pred_fallthru
          _
      $region32: #{tpu_custom_call.1} parent=5 // pred_fallthru
        _
      %p1126 = scmp.le.s32.totalorder 2, %s16
      // Predicated region
      $region45: #{tpu_custom_call.1} parent=5 // pred_check
        %p1127 = pneg %p1126
      $region46: #{tpu_custom_call.1} parent=5 // pred_check_branch
        %1129 = sbr.rel (%p1127) target = $region48
      $region47: #{tpu_custom_call.1} parent=5 // pred_region
        %s1130 = ssub.s32 %s16, 2
        // Predicated region
        $region49: #{tpu_custom_call.1} parent=47 // pred_check
          %p1131 = pneg %p113
        $region50: #{tpu_custom_call.1} parent=47 // pred_check_branch
          %1133 = sbr.rel (%p1131) target = $region52
        $region51: #{tpu_custom_call.1} parent=47 // pred_region
          %s1134 = sand.u32 %s98, 1
          %s1135 = scalar_lea.sflag [#allocation4], %s1134
          %s1136 = sand.u32 %s98, 1
          %s1137 = smul.addr %s1136, 64
          %s1138 = scalar_lea.vmem [#allocation7], %s1137
          %1139 = dma.done %s1135, 1024
        $region52: #{tpu_custom_call.1} parent=47 // pred_fallthru
          _
      $region48: #{tpu_custom_call.1} parent=5 // pred_fallthru
        _
    $region6: #{tpu_custom_call.1} parent=1 // loop_footer
      %s20 = sadd.s32 1, %s16
    $region7: #{tpu_custom_call.1} parent=1 // loop_footer_branch
      %15 = sbr.rel target = $region3
    $region8: #{tpu_custom_call.1} parent=1 // loop_exit
      _
    %1140 = vsyncpa [#allocation3], 1
    %s1141 = scalar_lea.sflag [#allocation3], 1
    %1142 = vsyncpa %s1141, 1
    %1143 = vsyncpa [#allocation6], 1
    %1144 = vsyncpa [#allocation4], 1
    %s1145 = scalar_lea.sflag [#allocation4], 1
    %1146 = vsyncpa %s1145, 1

</llo_original>
